<compile_context>
chip_gen: v5e
topology: v5e:2x2
jax: 0.10.0
libtpu: 0.0.40
codegen_flags: <defaults>
</compile_context>

<pallas_src>
import functools
import math

import numpy as np

import jax
import jax.numpy as jnp
from jax.experimental import pallas as pl
from jax.experimental.pallas import tpu as pltpu


# ----------------------------------------------------------------------------
# Helpers
# ----------------------------------------------------------------------------
def _round_up(n: int, m: int) -> int:
    return ((n + m - 1) // m) * m


def _default_vmem_limit_bytes() -> int:
    """Scoped-VMEM budget: 3/4 of physical VMEM, capped at 100 MiB."""
    cap = 64 << 20  # conservative fallback (= v7x physical VMEM per TC)
    try:
        info = pltpu.get_tpu_info()
        cap = int(getattr(info, "vmem_capacity_bytes", cap))
    except Exception:
        pass
    return int(max(32 << 20, min(100 << 20, (cap * 3) // 4)))


@functools.lru_cache(maxsize=1)
def _buffered1_supported() -> bool:
    """Targeted probe: does this JAX/Mosaic accept pl.Buffered(1) BlockSpecs?

    A tiny throwaway kernel is compiled once; this avoids swallowing unrelated
    errors from the real forward call.
    """
    try:
        spec = pl.BlockSpec((8, 128), lambda i: (0, 0), pipeline_mode=pl.Buffered(1))

        def k(a_ref, b_ref, o_ref):
            o_ref[...] = a_ref[...] + b_ref[...]

        out = pl.pallas_call(
            k,
            grid=(1,),
            in_specs=[pl.BlockSpec((8, 128), lambda i: (0, 0)), spec],
            out_specs=pl.BlockSpec((8, 128), lambda i: (0, 0)),
            out_shape=jax.ShapeDtypeStruct((8, 128), jnp.float32),
        )(jnp.zeros((8, 128), jnp.float32), jnp.ones((8, 128), jnp.float32))
        jax.block_until_ready(out)
        return True
    except Exception:
        return False


# ----------------------------------------------------------------------------
# One-time parameter preparation (hoisted out of the forward path)
# ----------------------------------------------------------------------------
def prepare_mlp_params(params, *, compute_dtype=jnp.bfloat16, lane=128):
    """Reformat torch-layout params (W (out,in), b (out,)) once.

    Returns (flat, meta):
      flat = (W0_t, b0, W1_t, b1, ..., Whead_t, bhead)
        * weights transposed to (in_pad, out_pad), cast to compute_dtype,
          zero-padded to multiples of `lane` (lane-dense MXU tiles),
        * biases (1, out_pad) in f32.
    Do this ONCE and reuse across forwards.
    """
    params = [(jnp.asarray(w), jnp.asarray(b)) for (w, b) in params]
    widths = [params[0][0].shape[1]] + [w.shape[0] for (w, _) in params]
    padded = [_round_up(d, lane) for d in widths]

    flat = []
    for li, (w, b) in enumerate(params):
        o_dim, i_dim = w.shape
        i_pad, o_pad = padded[li], padded[li + 1]
        w_t = jnp.pad(w.T.astype(compute_dtype),
                      ((0, i_pad - i_dim), (0, o_pad - o_dim)))
        b_p = jnp.pad(b.astype(jnp.float32), (0, o_pad - o_dim)).reshape(1, o_pad)
        flat += [w_t, b_p]

    meta = dict(widths=tuple(widths), padded=tuple(padded),
                compute_dtype=compute_dtype, lane=int(lane))
    return tuple(flat), meta


# ----------------------------------------------------------------------------
# Fused path: whole layer chain in one kernel, weights VMEM-resident
# ----------------------------------------------------------------------------
def _make_fused_kernel(num_hidden_layers: int, compute_dtype):
    def kernel(*refs):
        x_ref, out_ref = refs[0], refs[-1]
        p = refs[1:-1]
        h = x_ref[...]                                   # (block_m, in_pad)
        for li in range(num_hidden_layers):
            w = p[2 * li][...]                           # (in_pad, hid_pad)
            b = p[2 * li + 1][...]                       # (1, hid_pad) f32
            acc = jnp.dot(h, w, preferred_element_type=jnp.float32) + b
            h = jnp.maximum(acc, 0.0).astype(compute_dtype)  # bn/dropout = Identity
        y = jnp.dot(h, p[-2][...], preferred_element_type=jnp.float32) + p[-1][...]
        out_ref[...] = y.astype(out_ref.dtype)
    return kernel


@functools.partial(
    jax.jit,
    static_argnames=("block_m", "compute_dtype", "out_dtype", "out_features",
                     "single_buffer", "vmem_limit_bytes"),
)
def _fused_forward(x, flat, *, block_m, compute_dtype, out_dtype, out_features,
                   single_buffer, vmem_limit_bytes):
    batch, in_f = x.shape
    in_pad = flat[0].shape[0]
    out_pad = flat[-1].shape[1]
    num_hidden = len(flat) // 2 - 1

    padded_batch = _round_up(batch, block_m)
    grid = (padded_batch // block_m,)
    x_p = jnp.pad(x.astype(compute_dtype),
                  ((0, padded_batch - batch), (0, in_pad - in_f)))

    # Replicated weights/biases: constant index_map; single-buffer when supported
    # (fetched once, halves their VMEM footprint).
    param_kwargs = dict(pipeline_mode=pl.Buffered(1)) if single_buffer else {}
    in_specs = [pl.BlockSpec((block_m, in_pad), lambda i: (i, 0))]
    for p in flat:
        in_specs.append(pl.BlockSpec(p.shape, lambda i: (0, 0), **param_kwargs))

    y_p = pl.pallas_call(
        _make_fused_kernel(num_hidden, compute_dtype),
        grid=grid,
        in_specs=in_specs,
        out_specs=pl.BlockSpec((block_m, out_pad), lambda i: (i, 0)),
        out_shape=jax.ShapeDtypeStruct((padded_batch, out_pad), out_dtype),
        compiler_params=pltpu.CompilerParams(
            dimension_semantics=("parallel",),
            vmem_limit_bytes=int(vmem_limit_bytes)),
    )(x_p, *flat)

    return y_p[:batch, :out_features]


# ----------------------------------------------------------------------------
# Layered path: per-layer K/N-tiled matmul + bias (+relu), f32 accumulator
# ----------------------------------------------------------------------------
def _linear_kernel(x_ref, w_ref, b_ref, o_ref, acc_ref, *, relu):
    @pl.when(pl.program_id(2) == 0)
    def _():
        acc_ref[...] = jnp.zeros_like(acc_ref)

    acc_ref[...] += jnp.dot(x_ref[...], w_ref[...],
                            preferred_element_type=jnp.float32)

    @pl.when(pl.program_id(2) == pl.num_programs(2) - 1)
    def _():
        y = acc_ref[...] + b_ref[...]
        if relu:
            y = jnp.maximum(y, 0.0)
        o_ref[...] = y.astype(o_ref.dtype)


def _pick_tile(dim: int, candidates=(512, 256, 128)) -> int:
    for c in candidates:
        if dim % c == 0:
            return c
    return dim  # dims are lane-padded, so this branch is only a safety net


def _tiled_linear(x_p, w_p, b_p, *, tm, relu, out_dtype, vmem_limit_bytes):
    M, K = x_p.shape
    _, N = w_p.shape
    tn = _pick_tile(N)
    tk = _pick_tile(K)
    grid = (M // tm, N // tn, K // tk)
    return pl.pallas_call(
        functools.partial(_linear_kernel, relu=relu),
        grid=grid,
        in_specs=[pl.BlockSpec((tm, tk), lambda i, j, k: (i, k)),
                  pl.BlockSpec((tk, tn), lambda i, j, k: (k, j)),
                  pl.BlockSpec((1, tn), lambda i, j, k: (0, j))],
        out_specs=pl.BlockSpec((tm, tn), lambda i, j, k: (i, j)),
        out_shape=jax.ShapeDtypeStruct((M, N), out_dtype),
        scratch_shapes=[pltpu.VMEM((tm, tn), jnp.float32)],
        compiler_params=pltpu.CompilerParams(
            dimension_semantics=("parallel", "parallel", "arbitrary"),
            vmem_limit_bytes=int(vmem_limit_bytes)),
    )(x_p, w_p, b_p)


@functools.partial(
    jax.jit,
    static_argnames=("block_m", "compute_dtype", "out_dtype", "out_features",
                     "vmem_limit_bytes"),
)
def _layered_forward(x, flat, *, block_m, compute_dtype, out_dtype, out_features,
                     vmem_limit_bytes):
    batch, in_f = x.shape
    in_pad = flat[0].shape[0]
    num_layers = len(flat) // 2

    padded_batch = _round_up(batch, block_m)
    h = jnp.pad(x.astype(compute_dtype),
                ((0, padded_batch - batch), (0, in_pad - in_f)))
    for li in range(num_layers):
        w, b = flat[2 * li], flat[2 * li + 1]
        is_head = (li == num_layers - 1)
        h = _tiled_linear(h, w, b, tm=block_m, relu=not is_head,
                          out_dtype=(out_dtype if is_head else compute_dtype),
                          vmem_limit_bytes=vmem_limit_bytes)
    return h[:batch, :out_features]


# ----------------------------------------------------------------------------
# Wrapper: static path selection + batch-tile choice (outside jit)
# ----------------------------------------------------------------------------
def mlp_forward(x, prepared, *, block_m=512, single_buffer_params=True,
                vmem_limit_bytes=None, force_path=None):
    """Run the MLP Pallas kernel(s).

    `prepared` comes from `prepare_mlp_params` (done once, reused across calls).
    `block_m`: desired batch tile (512-1024 good for large batches; small
    batches collapse automatically). `force_path` in {None, "fused", "layered"}.
    """
    flat, meta = prepared
    compute_dtype = meta["compute_dtype"]
    padded = meta["padded"]
    widths = meta["widths"]
    out_features = widths[-1]
    if x.shape[1] != widths[0]:
        raise ValueError(f"x has {x.shape[1]} features, params expect {widths[0]}")
    if vmem_limit_bytes is None:
        vmem_limit_bytes = _default_vmem_limit_bytes()

    cds = np.dtype(compute_dtype).itemsize
    out_dtype = jnp.float32 if x.dtype == jnp.float32 else compute_dtype
    ods = np.dtype(out_dtype).itemsize

    batch = x.shape[0]
    sublane = 16 if cds == 2 else 8

    # Batch tile: large by default, collapsed for tiny batches, but with >=2
    # grid steps whenever the batch can be split (feeds both v7x TensorCores).
    bm = max(sublane, _round_up(min(int(block_m), _round_up(batch, sublane)), sublane))
    if _round_up(batch, bm) // bm < 2 and _round_up(batch, sublane) >= 2 * sublane:
        bm = min(bm, _round_up(-(-batch // 2), sublane))

    # VMEM budget check (advisory; 10% headroom for compiler internal scratch).
    single_buffer = bool(single_buffer_params) and _buffered1_supported()
    bufs = 1 if single_buffer else 2
    weight_bytes = sum(math.prod(p.shape) * p.dtype.itemsize for p in flat) * bufs
    per_row = 2 * (padded[0] * cds + padded[-1] * ods) + 2 * max(padded) * 4
    budget = int(vmem_limit_bytes * 0.9)

    if force_path == "fused":
        use_fused = True
    elif force_path == "layered":
        use_fused = False
    else:
        use_fused = weight_bytes + sublane * per_row <= budget

    if use_fused:
        if force_path != "fused":
            max_bm = (budget - weight_bytes) // per_row
            bm = max(sublane, min(bm, (max_bm // sublane) * sublane))
        y = _fused_forward(
            x, flat, block_m=int(bm), compute_dtype=compute_dtype,
            out_dtype=out_dtype, out_features=int(out_features),
            single_buffer=single_buffer, vmem_limit_bytes=int(vmem_limit_bytes))
    else:
        # Weights too large for VMEM residency (e.g. wide layers on v7x):
        # stream weight tiles per layer with the K/N-tiled kernel.
        y = _layered_forward(
            x, flat, block_m=int(bm), compute_dtype=compute_dtype,
            out_dtype=out_dtype, out_features=int(out_features),
            vmem_limit_bytes=int(vmem_limit_bytes))
    return y.astype(x.dtype)


# ----------------------------------------------------------------------------
# Init + reference
# ----------------------------------------------------------------------------
def init_mlp_params(key, in_channels, hidden, out_channels, dtype=jnp.float32):
    """torch.nn.Linear-style init: U(-1/sqrt(fan_in), .); W (out, in), b (out,)."""
    if isinstance(hidden, int):
        hidden = [hidden]
    if hidden is None:
        hidden = []
    channels = [in_channels] + list(hidden) + [out_channels]
    params = []
    for i, o in zip(channels[:-1], channels[1:]):
        key, kw, kb = jax.random.split(key, 3)
        bound = 1.0 / (i ** 0.5)
        w = jax.random.uniform(kw, (o, i), dtype=dtype, minval=-bound, maxval=bound)
        b = jax.random.uniform(kb, (o,), dtype=dtype, minval=-bound, maxval=bound)
        params.append((w, b))
    return params


def mlp_reference(x, params, compute_dtype=jnp.float32):
    """Pure-JAX reference; compute_dtype mirrors the kernel's matmul precision."""
    h = x.astype(compute_dtype)
    for w, b in params[:-1]:
        acc = jnp.dot(h, w.T.astype(compute_dtype), preferred_element_type=jnp.float32)
        acc = acc + b.astype(jnp.float32)
        h = jnp.maximum(acc, 0.0).astype(compute_dtype)
    wh, bh = params[-1]
    y = jnp.dot(h, wh.T.astype(compute_dtype), preferred_element_type=jnp.float32)
    y = y + bh.astype(jnp.float32)
    return y.astype(x.dtype)


# ----------------------------------------------------------------------------
# Demo / correctness check
# ----------------------------------------------------------------------------
if __name__ == "__main__":
    key = jax.random.PRNGKey(0)

    # Shapes consistent with _MLP(in_channels=16, out_channels=8, hidden=[32, 64]).
    batch, in_channels, hidden, out_channels = 32, 16, [32, 64], 8

    kx, kp = jax.random.split(key)
    x = jax.random.normal(kx, (batch, in_channels), dtype=jnp.float32)
    params = init_mlp_params(kp, in_channels, hidden, out_channels)

    # One-time weight reformatting (hoisted out of the forward path).
    prepared = prepare_mlp_params(params)

    # Fused (auto-selected) path.
    y = jax.block_until_ready(mlp_forward(x, prepared))
    assert y.shape == (batch, out_channels)

    # K/N-tiled layered path (used automatically for weights that exceed VMEM).
    y_layered = jax.block_until_ready(mlp_forward(x, prepared, force_path="layered"))
    assert y_layered.shape == (batch, out_channels)

    # Numerics-matched reference (bf16 matmul inputs, f32 accumulation).
    y_ref_bf16 = mlp_reference(x, params, compute_dtype=jnp.bfloat16)
    assert jnp.allclose(y, y_ref_bf16, atol=2e-2, rtol=2e-2), "fused vs bf16 ref"
    assert jnp.allclose(y_layered, y_ref_bf16, atol=2e-2, rtol=2e-2), "layered vs bf16 ref"

    # Loose check against a pure-f32 reference (bf16 rounding tolerance).
    y_ref_f32 = mlp_reference(x, params, compute_dtype=jnp.float32)
    assert jnp.allclose(y, y_ref_f32, atol=1e-1, rtol=1e-1), "fused vs f32 ref"

    print("KERNEL_OK")
</pallas_src>

<mosaic_0001>
module attributes {stable_mosaic.version = 11 : i64} {
  func.func @k(%arg0: i32, %arg1: memref<8x128xf32, #tpu.memory_space<vmem>>, %arg2: memref<8x128xf32, #tpu.memory_space<vmem>>, %arg3: memref<8x128xf32, #tpu.memory_space<vmem>>) attributes {dimension_semantics = [#tpu.dimension_semantics<arbitrary>], iteration_bounds = array<i64: 1>, scalar_prefetch = 0 : i64, scratch_operands = 0 : i64, tpu.core_type = #tpu.core_type<tc>, window_params = [{pipeline_mode = #tpu.pipeline_mode<synchronous>, transform_indices = @transform_0, window_bounds = array<i64: 8, 128>}, {pipeline_mode = #tpu.pipeline_mode<synchronous>, transform_indices = @transform_1, window_bounds = array<i64: 8, 128>}, {pipeline_mode = #tpu.pipeline_mode<synchronous>, transform_indices = @transform_2, window_bounds = array<i64: 8, 128>}]} {
    %c0 = arith.constant 0 : index
    %c0_0 = arith.constant 0 : index
    %0 = vector.load %arg1[%c0, %c0_0] : memref<8x128xf32, #tpu.memory_space<vmem>>, vector<8x128xf32>
    %c0_1 = arith.constant 0 : index
    %c0_2 = arith.constant 0 : index
    %1 = vector.load %arg2[%c0_1, %c0_2] : memref<8x128xf32, #tpu.memory_space<vmem>>, vector<8x128xf32>
    %2 = arith.addf %0, %1 : vector<8x128xf32>
    %c0_3 = arith.constant 0 : index
    %c0_4 = arith.constant 0 : index
    %3 = vector.load %arg3[%c0_3, %c0_4] : memref<8x128xf32, #tpu.memory_space<vmem>>, vector<8x128xf32>
    tpu.vector_store %arg3[%c0_3, %c0_4], %2 {strides = array<i32>} : memref<8x128xf32, #tpu.memory_space<vmem>>, vector<8x128xf32>,
    return
  }
  func.func @transform_0(%arg0: i32) -> (i32, i32) {
    %c0_i32 = arith.constant 0 : i32
    %c0_i32_0 = arith.constant 0 : i32
    %c0_i32_1 = arith.constant 0 : i32
    return %c0_i32, %c0_i32_0 : i32, i32
  }
  func.func @transform_1(%arg0: i32) -> (i32, i32) {
    %c0_i32 = arith.constant 0 : i32
    %c0_i32_0 = arith.constant 0 : i32
    %c0_i32_1 = arith.constant 0 : i32
    return %c0_i32, %c0_i32_0 : i32, i32
  }
  func.func @transform_2(%arg0: i32) -> (i32, i32) {
    %c0_i32 = arith.constant 0 : i32
    %c0_i32_0 = arith.constant 0 : i32
    %c0_i32_1 = arith.constant 0 : i32
    return %c0_i32, %c0_i32_0 : i32, i32
  }
}

module attributes {stable_mosaic.version = 11 : i64} {
  func.func @kernel(%arg0: i32, %arg1: memref<16x128xbf16, #tpu.memory_space<vmem>>, %arg2: memref<128x128xbf16, #tpu.memory_space<vmem>>, %arg3: memref<1x128xf32, #tpu.memory_space<vmem>>, %arg4: memref<128x128xbf16, #tpu.memory_space<vmem>>, %arg5: memref<1x128xf32, #tpu.memory_space<vmem>>, %arg6: memref<128x128xbf16, #tpu.memory_space<vmem>>, %arg7: memref<1x128xf32, #tpu.memory_space<vmem>>, %arg8: memref<16x128xf32, #tpu.memory_space<vmem>>) attributes {dimension_semantics = [#tpu.dimension_semantics<parallel>], iteration_bounds = array<i64: 2>, scalar_prefetch = 0 : i64, scratch_operands = 0 : i64, tpu.core_type = #tpu.core_type<tc>, window_params = [{transform_indices = @transform_0, window_bounds = array<i64: 16, 128>}, {pipeline_mode = #tpu.pipeline_mode<synchronous>, transform_indices = @transform_1, window_bounds = array<i64: 128, 128>}, {pipeline_mode = #tpu.pipeline_mode<synchronous>, transform_indices = @transform_2, window_bounds = array<i64: 1, 128>}, {pipeline_mode = #tpu.pipeline_mode<synchronous>, transform_indices = @transform_3, window_bounds = array<i64: 128, 128>}, {pipeline_mode = #tpu.pipeline_mode<synchronous>, transform_indices = @transform_4, window_bounds = array<i64: 1, 128>}, {pipeline_mode = #tpu.pipeline_mode<synchronous>, transform_indices = @transform_5, window_bounds = array<i64: 128, 128>}, {pipeline_mode = #tpu.pipeline_mode<synchronous>, transform_indices = @transform_6, window_bounds = array<i64: 1, 128>}, {transform_indices = @transform_7, window_bounds = array<i64: 16, 128>}]} {
    %c0 = arith.constant 0 : index
    %c0_0 = arith.constant 0 : index
    %0 = vector.load %arg1[%c0, %c0_0] : memref<16x128xbf16, #tpu.memory_space<vmem>>, vector<16x128xbf16>
    %c0_1 = arith.constant 0 : index
    %c0_2 = arith.constant 0 : index
    %1 = vector.load %arg2[%c0_1, %c0_2] : memref<128x128xbf16, #tpu.memory_space<vmem>>, vector<128x128xbf16>
    %c0_3 = arith.constant 0 : index
    %c0_4 = arith.constant 0 : index
    %2 = vector.load %arg3[%c0_3, %c0_4] : memref<1x128xf32, #tpu.memory_space<vmem>>, vector<1x128xf32>
    %cst = arith.constant dense<0.000000e+00> : vector<16x128xf32>
    %3 = tpu.matmul %0, %1, %cst {dimension_numbers = #tpu.dot_dimension_numbers<[1], [0], [0], [1], [0, 0, 1, 1], [], []>} : vector<16x128xbf16>, vector<128x128xbf16>, vector<16x128xf32> -> vector<16x128xf32>
    %4 = vector.broadcast %2 : vector<1x128xf32> to vector<16x128xf32>
    %5 = arith.addf %3, %4 : vector<16x128xf32>
    %cst_5 = arith.constant 0.000000e+00 : f32
    %6 = vector.broadcast %cst_5 : f32 to vector<16x128xf32>
    %7 = arith.maximumf %5, %6 : vector<16x128xf32>
    %8 = arith.truncf %7 : vector<16x128xf32> to vector<16x128xbf16>
    %c0_6 = arith.constant 0 : index
    %c0_7 = arith.constant 0 : index
    %9 = vector.load %arg4[%c0_6, %c0_7] : memref<128x128xbf16, #tpu.memory_space<vmem>>, vector<128x128xbf16>
    %c0_8 = arith.constant 0 : index
    %c0_9 = arith.constant 0 : index
    %10 = vector.load %arg5[%c0_8, %c0_9] : memref<1x128xf32, #tpu.memory_space<vmem>>, vector<1x128xf32>
    %cst_10 = arith.constant dense<0.000000e+00> : vector<16x128xf32>
    %11 = tpu.matmul %8, %9, %cst_10 {dimension_numbers = #tpu.dot_dimension_numbers<[1], [0], [0], [1], [0, 0, 1, 1], [], []>} : vector<16x128xbf16>, vector<128x128xbf16>, vector<16x128xf32> -> vector<16x128xf32>
    %12 = vector.broadcast %10 : vector<1x128xf32> to vector<16x128xf32>
    %13 = arith.addf %11, %12 : vector<16x128xf32>
    %cst_11 = arith.constant 0.000000e+00 : f32
    %14 = vector.broadcast %cst_11 : f32 to vector<16x128xf32>
    %15 = arith.maximumf %13, %14 : vector<16x128xf32>
    %16 = arith.truncf %15 : vector<16x128xf32> to vector<16x128xbf16>
    %c0_12 = arith.constant 0 : index
    %c0_13 = arith.constant 0 : index
    %17 = vector.load %arg6[%c0_12, %c0_13] : memref<128x128xbf16, #tpu.memory_space<vmem>>, vector<128x128xbf16>
    %cst_14 = arith.constant dense<0.000000e+00> : vector<16x128xf32>
    %18 = tpu.matmul %16, %17, %cst_14 {dimension_numbers = #tpu.dot_dimension_numbers<[1], [0], [0], [1], [0, 0, 1, 1], [], []>} : vector<16x128xbf16>, vector<128x128xbf16>, vector<16x128xf32> -> vector<16x128xf32>
    %c0_15 = arith.constant 0 : index
    %c0_16 = arith.constant 0 : index
    %19 = vector.load %arg7[%c0_15, %c0_16] : memref<1x128xf32, #tpu.memory_space<vmem>>, vector<1x128xf32>
    %20 = vector.broadcast %19 : vector<1x128xf32> to vector<16x128xf32>
    %21 = arith.addf %18, %20 : vector<16x128xf32>
    %c0_17 = arith.constant 0 : index
    %c0_18 = arith.constant 0 : index
    %22 = vector.load %arg8[%c0_17, %c0_18] : memref<16x128xf32, #tpu.memory_space<vmem>>, vector<16x128xf32>
    tpu.vector_store %arg8[%c0_17, %c0_18], %21 {strides = array<i32>} : memref<16x128xf32, #tpu.memory_space<vmem>>, vector<16x128xf32>,
    return
  }
  func.func @transform_0(%arg0: i32) -> (i32, i32) {
    %c0_i32 = arith.constant 0 : i32
    %c0_i32_0 = arith.constant 0 : i32
    return %arg0, %c0_i32 : i32, i32
  }
  func.func @transform_1(%arg0: i32) -> (i32, i32) {
    %c0_i32 = arith.constant 0 : i32
    %c0_i32_0 = arith.constant 0 : i32
    %c0_i32_1 = arith.constant 0 : i32
    return %c0_i32, %c0_i32_0 : i32, i32
  }
  func.func @transform_2(%arg0: i32) -> (i32, i32) {
    %c0_i32 = arith.constant 0 : i32
    %c0_i32_0 = arith.constant 0 : i32
    %c0_i32_1 = arith.constant 0 : i32
    return %c0_i32, %c0_i32_0 : i32, i32
  }
  func.func @transform_3(%arg0: i32) -> (i32, i32) {
    %c0_i32 = arith.constant 0 : i32
    %c0_i32_0 = arith.constant 0 : i32
    %c0_i32_1 = arith.constant 0 : i32
    return %c0_i32, %c0_i32_0 : i32, i32
  }
  func.func @transform_4(%arg0: i32) -> (i32, i32) {
    %c0_i32 = arith.constant 0 : i32
    %c0_i32_0 = arith.constant 0 : i32
    %c0_i32_1 = arith.constant 0 : i32
    return %c0_i32, %c0_i32_0 : i32, i32
  }
  func.func @transform_5(%arg0: i32) -> (i32, i32) {
    %c0_i32 = arith.constant 0 : i32
    %c0_i32_0 = arith.constant 0 : i32
    %c0_i32_1 = arith.constant 0 : i32
    return %c0_i32, %c0_i32_0 : i32, i32
  }
  func.func @transform_6(%arg0: i32) -> (i32, i32) {
    %c0_i32 = arith.constant 0 : i32
    %c0_i32_0 = arith.constant 0 : i32
    %c0_i32_1 = arith.constant 0 : i32
    return %c0_i32, %c0_i32_0 : i32, i32
  }
  func.func @transform_7(%arg0: i32) -> (i32, i32) {
    %c0_i32 = arith.constant 0 : i32
    %c0_i32_0 = arith.constant 0 : i32
    return %arg0, %c0_i32 : i32, i32
  }
}

</mosaic_0001>

<llo_original>
// kernel: tpu_custom_call.1
$region0: #{tpu_custom_call.1}
  #allocation0 [shape = 'u32[]', space=smem, size = 0x4, offset = 0x4, fixed_abs, tag = 'smem constant byte address 0x4 - core index']
  #allocation1 [shape = 'u32[72,128]{1,0:T(1,128)}', space=vmem, size = 0x9000, scoped, tag = 'internal scratch']
  %s0 = inlined_call_operand.hbm [shape: f32[8,128], index: 0, kind: input, shape index: {}]
  %s1 = inlined_call_operand.hbm [shape: f32[8,128], index: 1, kind: input, shape index: {}]
  %s2 = inlined_call_operand.hbm [shape: f32[8,128], index: 2, kind: output, shape index: {}]
  %s3 = sld [smem:[#allocation0]]
  $region26: #{tpu_custom_call.1} parent=0
    _
  %s5 = ssub.s32 1, %s3
  %s6 = scalar_select 0, %s5, %s3
  $region1: #{tpu_custom_call.1} parent=0
    #allocation2 [shape = 'u8[4096]{0}', space=vmem, size = 0x1000, scoped, tag = 'input window, operand 0, single buffered']
    #allocation3 [shape = 's32[1]{0}', space=sflag, size = 0x4, scoped, tag = 'scoped memory for tpu_custom_call.1']
    #allocation4 [shape = 's32[1]{0}', space=sflag, size = 0x4, scoped, tag = 'scoped memory for tpu_custom_call.1']
    #allocation5 [shape = 'u8[4096]{0}', space=vmem, size = 0x1000, scoped, tag = 'input window, operand 1, single buffered']
    #allocation6 [shape = 's32[1]{0}', space=sflag, size = 0x4, scoped, tag = 'scoped memory for tpu_custom_call.1']
    #allocation7 [shape = 'u8[4096]{0}', space=vmem, size = 0x1000, scoped, tag = 'output window, operand 0, single buffered']
    %7 = vsyncpa [#allocation3], 0
    %8 = vsyncpa [#allocation6], 0
    %9 = vsyncpa [#allocation4], 0
    // Predicated region
    $region2: #{tpu_custom_call.1} parent=1 // pred_check
      _
    $region3: #{tpu_custom_call.1} parent=1 // pred_check_branch
      %11 = sbr.rel (0) target = $region5
    $region4: #{tpu_custom_call.1} parent=1 // pred_region
      %13 = vsyncadd [#allocation3], 0
      %s15 = sshll.u32 %s0, 4
      %s16 = int_to_ptr.hbm [resolvable:$true] %s15
      %s17 = sshll.u32 [#allocation2], 4
      %s18 = int_to_ptr.vmem [resolvable:$true] %s17
      %20 = dma.hbm_to_vmem [thread:$0]  %s16, 128, %s18, [#allocation3]
    $region5: #{tpu_custom_call.1} parent=1 // pred_fallthru
      _
    // Predicated region
    $region6: #{tpu_custom_call.1} parent=1 // pred_check
      _
    $region7: #{tpu_custom_call.1} parent=1 // pred_check_branch
      %22 = sbr.rel (0) target = $region9
    $region8: #{tpu_custom_call.1} parent=1 // pred_region
      %24 = vsyncadd [#allocation6], 0
      %s26 = sshll.u32 %s1, 4
      %s27 = int_to_ptr.hbm [resolvable:$true] %s26
      %s28 = sshll.u32 [#allocation5], 4
      %s29 = int_to_ptr.vmem [resolvable:$true] %s28
      %31 = dma.hbm_to_vmem [thread:$0]  %s27, 128, %s29, [#allocation6]
    $region9: #{tpu_custom_call.1} parent=1 // pred_fallthru
      _
    // Predicated region
    $region10: #{tpu_custom_call.1} parent=1 // pred_check
      _
    $region11: #{tpu_custom_call.1} parent=1 // pred_check_branch
      %33 = sbr.rel (0) target = $region13
    $region12: #{tpu_custom_call.1} parent=1 // pred_region
      %35 = dma.done [#allocation3], 128
    $region13: #{tpu_custom_call.1} parent=1 // pred_fallthru
      _
    // Predicated region
    $region14: #{tpu_custom_call.1} parent=1 // pred_check
      _
    $region15: #{tpu_custom_call.1} parent=1 // pred_check_branch
      %37 = sbr.rel (0) target = $region17
    $region16: #{tpu_custom_call.1} parent=1 // pred_region
      %39 = dma.done [#allocation6], 128
    $region17: #{tpu_custom_call.1} parent=1 // pred_fallthru
      _
    %v40 = vld [vmem:[#allocation2] sm:$0xff]
    %v41 = vld [vmem:[#allocation5] sm:$0xff]
    %v42 = vadd.f32 %v40, %v41
    %43 = vst [vmem:[#allocation7] sm:$0xff] %v42
    // Predicated region
    $region18: #{tpu_custom_call.1} parent=1 // pred_check
      _
    $region19: #{tpu_custom_call.1} parent=1 // pred_check_branch
      %45 = sbr.rel (0) target = $region21
    $region20: #{tpu_custom_call.1} parent=1 // pred_region
      %47 = vsyncadd [#allocation4], 0
      %s49 = sshll.u32 [#allocation7], 4
      %s50 = int_to_ptr.vmem [resolvable:$true] %s49
      %s51 = sshll.u32 %s2, 4
      %s52 = int_to_ptr.hbm [resolvable:$true] %s51
      %54 = dma.vmem_to_hbm [thread:$0]  %s50, 128, %s52, [#allocation4]
    $region21: #{tpu_custom_call.1} parent=1 // pred_fallthru
      _
    // Predicated region
    $region22: #{tpu_custom_call.1} parent=1 // pred_check
      _
    $region23: #{tpu_custom_call.1} parent=1 // pred_check_branch
      %56 = sbr.rel (0) target = $region25
    $region24: #{tpu_custom_call.1} parent=1 // pred_region
      %58 = dma.done [#allocation4], 128
    $region25: #{tpu_custom_call.1} parent=1 // pred_fallthru
      _
    %59 = vsyncpa [#allocation3], 1
    %60 = vsyncpa [#allocation6], 1
    %61 = vsyncpa [#allocation4], 1

// kernel: _fused_forward.1
$region0: #{_fused_forward.1}
  #allocation0 [shape = 'u32[]', space=smem, size = 0x4, offset = 0x4, fixed_abs, tag = 'smem constant byte address 0x4 - core index']
  #allocation1 [shape = 'u32[72,128]{1,0:T(1,128)}', space=vmem, size = 0x9000, scoped, tag = 'internal scratch']
  %s0 = inlined_call_operand.vmem [shape: bf16[32,128], index: 0, kind: input, shape index: {}]
  %s1 = inlined_call_operand.vmem [shape: bf16[128,128], index: 1, kind: input, shape index: {}]
  %s2 = inlined_call_operand.vmem [shape: f32[1,128], index: 2, kind: input, shape index: {}]
  %s3 = inlined_call_operand.hbm [shape: bf16[128,128], index: 3, kind: input, shape index: {}]
  %s4 = inlined_call_operand.vmem [shape: f32[1,128], index: 4, kind: input, shape index: {}]
  %s5 = inlined_call_operand.hbm [shape: bf16[128,128], index: 5, kind: input, shape index: {}]
  %s6 = inlined_call_operand.vmem [shape: f32[1,128], index: 6, kind: input, shape index: {}]
  %s7 = inlined_call_operand.vmem [shape: f32[32,128], index: 7, kind: output, shape index: {}]
  %s8 = sld [smem:[#allocation0]]
  $region69: #{_fused_forward.1} parent=0
    _
  %s10 = ssub.s32 1, %s8
  %s11 = scalar_select 0, %s10, %s8
  $region1: #{_fused_forward.1} parent=0
    #allocation2 [shape = 'u8[32768]{0}', space=vmem, size = 0x8000, scoped, tag = 'input window, operand 3, single buffered']
    #allocation3 [shape = 's32[2]{0}', space=sflag, size = 0x8, scoped, tag = 'scoped memory for _fused_forward.1']
    #allocation4 [shape = 'u8[32768]{0}', space=vmem, size = 0x8000, scoped, tag = 'input window, operand 5, single buffered']
    #allocation5 [shape = 's32[1]{0}', space=sflag, size = 0x4, scoped, tag = 'scoped memory for _fused_forward.1']
    %12 = vsyncpa [#allocation3], 0
    %13 = vsyncpa [#allocation5], 0
    loop: start=0, step=1, limit=4
    $region2: #{_fused_forward.1} parent=1 // loop_pre_header
      _
    $region3: #{_fused_forward.1} parent=1 // loop_header
      %s15 = sphi 0, %s19
      %p16 = scmp.ge.s32.totalorder %s15, 4
      %s25 = sphi 0, %s27
      %s28 = sphi 0, %s25
      %s29 = sphi 0, %s28
      %s45 = sphi 0, %s29
      %s49 = sphi 0, %s49
      %s51 = sphi 0, %s49
      %s52 = sphi 0, %s51
      %s66 = sphi 0, %s52
      %s70 = sphi 0, %s70
      %s72 = sphi 0, %s70
      %s73 = sphi 0, %s72
      %s87 = sphi 0, %s73
      %s91 = sphi 0, %s91
      %s93 = sphi 0, %s91
      %s94 = sphi 0, %s93
      %s108 = sphi 0, %s94
      %s112 = sphi 0, %s112
      %s114 = sphi 0, %s112
      %s115 = sphi 0, %s114
      %s129 = sphi 0, %s115
      %s133 = sphi 0, %s133
      %s135 = sphi 0, %s133
      %s136 = sphi 0, %s135
      %s150 = sphi 0, %s136
      %s154 = sphi 0, %s154
      %s156 = sphi 0, %s154
      %s157 = sphi 0, %s156
      %s171 = sphi 0, %s157
      %s177 = sphi 0, %s179
      %s180 = sphi 0, %s177
      %s181 = sphi 0, %s180
      %s197 = sphi 0, %s181
    $region4: #{_fused_forward.1} parent=1 // loop_header_branch
      %18 = sbr.rel (%p16) target = $region8
    $region5: #{_fused_forward.1} parent=1 // loop_body
      %s20 = ssub.s32 %s15, 1
      %s21 = ssub.s32 %s15, 2
      %s22 = sadd.s32 %s15, 1
      %s23 = ssub.s32 %s15, %s22
      %p24 = scmp.eq.s32.totalorder %s23, 0
      %s26 = sadd.s32 %s25, 1
      %s27 = scalar_select %p24, %s25, %s26
      %p30 = pneg %p24
      %p31 = scmp.eq.s32.totalorder %s15, 1
      %p32 = por %p30, %p31
      %p33 = scmp.ne.s32.totalorder %s25, %s28
      %p34 = scmp.eq.s32.totalorder %s15, 0
      %p35 = por %p33, %p34
      %p36 = scmp.ne.s32.totalorder %s25, %s28
      %p37 = scmp.eq.s32.totalorder %s20, 1
      %p38 = por %p36, %p37
      %p39 = scmp.ne.s32.totalorder %s28, %s29
      %p40 = scmp.eq.s32.totalorder %s20, 0
      %p41 = por %p39, %p40
      %p42 = scmp.ne.s32.totalorder %s28, %s29
      %p43 = scmp.eq.s32.totalorder %s21, 1
      %p44 = por %p42, %p43
      %p46 = scmp.ne.s32.totalorder %s29, %s45
      %p47 = scmp.eq.s32.totalorder %s21, 0
      %p48 = por %p46, %p47
      %s50 = sadd.s32 %s49, 1
      %p53 = scmp.eq.s32.totalorder %s15, 1
      %p54 = scmp.ne.s32.totalorder %s49, %s51
      %p55 = scmp.eq.s32.totalorder %s15, 0
      %p56 = por %p54, %p55
      %p57 = scmp.ne.s32.totalorder %s49, %s51
      %p58 = scmp.eq.s32.totalorder %s20, 1
      %p59 = por %p57, %p58
      %p60 = scmp.ne.s32.totalorder %s51, %s52
      %p61 = scmp.eq.s32.totalorder %s20, 0
      %p62 = por %p60, %p61
      %p63 = scmp.ne.s32.totalorder %s51, %s52
      %p64 = scmp.eq.s32.totalorder %s21, 1
      %p65 = por %p63, %p64
      %p67 = scmp.ne.s32.totalorder %s52, %s66
      %p68 = scmp.eq.s32.totalorder %s21, 0
      %p69 = por %p67, %p68
      %s71 = sadd.s32 %s70, 1
      %p74 = scmp.eq.s32.totalorder %s15, 1
      %p75 = scmp.ne.s32.totalorder %s70, %s72
      %p76 = scmp.eq.s32.totalorder %s15, 0
      %p77 = por %p75, %p76
      %p78 = scmp.ne.s32.totalorder %s70, %s72
      %p79 = scmp.eq.s32.totalorder %s20, 1
      %p80 = por %p78, %p79
      %p81 = scmp.ne.s32.totalorder %s72, %s73
      %p82 = scmp.eq.s32.totalorder %s20, 0
      %p83 = por %p81, %p82
      %p84 = scmp.ne.s32.totalorder %s72, %s73
      %p85 = scmp.eq.s32.totalorder %s21, 1
      %p86 = por %p84, %p85
      %p88 = scmp.ne.s32.totalorder %s73, %s87
      %p89 = scmp.eq.s32.totalorder %s21, 0
      %p90 = por %p88, %p89
      %s92 = sadd.s32 %s91, 1
      %p95 = scmp.eq.s32.totalorder %s15, 1
      %p96 = scmp.ne.s32.totalorder %s91, %s93
      %p97 = scmp.eq.s32.totalorder %s15, 0
      %p98 = por %p96, %p97
      %p99 = scmp.ne.s32.totalorder %s91, %s93
      %p100 = scmp.eq.s32.totalorder %s20, 1
      %p101 = por %p99, %p100
      %p102 = scmp.ne.s32.totalorder %s93, %s94
      %p103 = scmp.eq.s32.totalorder %s20, 0
      %p104 = por %p102, %p103
      %p105 = scmp.ne.s32.totalorder %s93, %s94
      %p106 = scmp.eq.s32.totalorder %s21, 1
      %p107 = por %p105, %p106
      %p109 = scmp.ne.s32.totalorder %s94, %s108
      %p110 = scmp.eq.s32.totalorder %s21, 0
      %p111 = por %p109, %p110
      %s113 = sadd.s32 %s112, 1
      %p116 = scmp.eq.s32.totalorder %s15, 1
      %p117 = scmp.ne.s32.totalorder %s112, %s114
      %p118 = scmp.eq.s32.totalorder %s15, 0
      %p119 = por %p117, %p118
      %p120 = scmp.ne.s32.totalorder %s112, %s114
      %p121 = scmp.eq.s32.totalorder %s20, 1
      %p122 = por %p120, %p121
      %p123 = scmp.ne.s32.totalorder %s114, %s115
      %p124 = scmp.eq.s32.totalorder %s20, 0
      %p125 = por %p123, %p124
      %p126 = scmp.ne.s32.totalorder %s114, %s115
      %p127 = scmp.eq.s32.totalorder %s21, 1
      %p128 = por %p126, %p127
      %p130 = scmp.ne.s32.totalorder %s115, %s129
      %p131 = scmp.eq.s32.totalorder %s21, 0
      %p132 = por %p130, %p131
      %s134 = sadd.s32 %s133, 1
      %p137 = scmp.eq.s32.totalorder %s15, 1
      %p138 = scmp.ne.s32.totalorder %s133, %s135
      %p139 = scmp.eq.s32.totalorder %s15, 0
      %p140 = por %p138, %p139
      %p141 = scmp.ne.s32.totalorder %s133, %s135
      %p142 = scmp.eq.s32.totalorder %s20, 1
      %p143 = por %p141, %p142
      %p144 = scmp.ne.s32.totalorder %s135, %s136
      %p145 = scmp.eq.s32.totalorder %s20, 0
      %p146 = por %p144, %p145
      %p147 = scmp.ne.s32.totalorder %s135, %s136
      %p148 = scmp.eq.s32.totalorder %s21, 1
      %p149 = por %p147, %p148
      %p151 = scmp.ne.s32.totalorder %s136, %s150
      %p152 = scmp.eq.s32.totalorder %s21, 0
      %p153 = por %p151, %p152
      %s155 = sadd.s32 %s154, 1
      %p158 = scmp.eq.s32.totalorder %s15, 1
      %p159 = scmp.ne.s32.totalorder %s154, %s156
      %p160 = scmp.eq.s32.totalorder %s15, 0
      %p161 = por %p159, %p160
      %p162 = scmp.ne.s32.totalorder %s154, %s156
      %p163 = scmp.eq.s32.totalorder %s20, 1
      %p164 = por %p162, %p163
      %p165 = scmp.ne.s32.totalorder %s156, %s157
      %p166 = scmp.eq.s32.totalorder %s20, 0
      %p167 = por %p165, %p166
      %p168 = scmp.ne.s32.totalorder %s156, %s157
      %p169 = scmp.eq.s32.totalorder %s21, 1
      %p170 = por %p168, %p169
      %p172 = scmp.ne.s32.totalorder %s157, %s171
      %p173 = scmp.eq.s32.totalorder %s21, 0
      %p174 = por %p172, %p173
      %s175 = ssub.s32 %s15, %s22
      %p176 = scmp.eq.s32.totalorder %s175, 0
      %s178 = sadd.s32 %s177, 1
      %s179 = scalar_select %p176, %s177, %s178
      %p182 = pneg %p176
      %p183 = scmp.eq.s32.totalorder %s15, 1
      %p184 = por %p182, %p183
      %p185 = scmp.ne.s32.totalorder %s177, %s180
      %p186 = scmp.eq.s32.totalorder %s15, 0
      %p187 = por %p185, %p186
      %p188 = scmp.ne.s32.totalorder %s177, %s180
      %p189 = scmp.eq.s32.totalorder %s20, 1
      %p190 = por %p188, %p189
      %p191 = scmp.ne.s32.totalorder %s180, %s181
      %p192 = scmp.eq.s32.totalorder %s20, 0
      %p193 = por %p191, %p192
      %p194 = scmp.ne.s32.totalorder %s180, %s181
      %p195 = scmp.eq.s32.totalorder %s21, 1
      %p196 = por %p194, %p195
      %p198 = scmp.ne.s32.totalorder %s181, %s197
      %p199 = scmp.eq.s32.totalorder %s21, 0
      %p200 = por %p198, %p199
      %p201 = scmp.le.s32.totalorder 1, %s15
      %p202 = scmp.lt.s32.totalorder %s15, 3
      %p203 = pnand %p201, %p202
      %p204 = pneg %p203
      // Predicated region
      $region9: #{_fused_forward.1} parent=5 // pred_check
        _
      $region10: #{_fused_forward.1} parent=5 // pred_check_branch
        %206 = sbr.rel (%p203) target = $region12
      $region11: #{_fused_forward.1} parent=5 // pred_region
        %s207 = ssub.s32 %s15, 1
        // Predicated region
        $region13: #{_fused_forward.1} parent=11 // pred_check
          %p208 = pneg %p62
        $region14: #{_fused_forward.1} parent=11 // pred_check_branch
          %210 = sbr.rel (%p208) target = $region16
        $region15: #{_fused_forward.1} parent=11 // pred_region
          _
        $region16: #{_fused_forward.1} parent=11 // pred_fallthru
          _
        // Predicated region
        $region17: #{_fused_forward.1} parent=11 // pred_check
          %p211 = pneg %p83
        $region18: #{_fused_forward.1} parent=11 // pred_check_branch
          %213 = sbr.rel (%p211) target = $region20
        $region19: #{_fused_forward.1} parent=11 // pred_region
          _
        $region20: #{_fused_forward.1} parent=11 // pred_fallthru
          _
        // Predicated region
        $region21: #{_fused_forward.1} parent=11 // pred_check
          %p214 = pneg %p104
        $region22: #{_fused_forward.1} parent=11 // pred_check_branch
          %216 = sbr.rel (%p214) target = $region24
        $region23: #{_fused_forward.1} parent=11 // pred_region
          %218 = vsyncadd [#allocation3], 0
          %s219 = sshll.u32 %s3, 4
          %s220 = int_to_ptr.hbm [resolvable:$true] %s219
          %s221 = sshll.u32 [#allocation2], 4
          %s222 = int_to_ptr.vmem [resolvable:$true] %s221
          %227 = dma.hbm_to_vmem [thread:$0]  %s220, 1024, %s222, [#allocation3], 64, 64, 4
        $region24: #{_fused_forward.1} parent=11 // pred_fallthru
          _
        // Predicated region
        $region25: #{_fused_forward.1} parent=11 // pred_check
          %p228 = pneg %p125
        $region26: #{_fused_forward.1} parent=11 // pred_check_branch
          %230 = sbr.rel (%p228) target = $region28
        $region27: #{_fused_forward.1} parent=11 // pred_region
          _
        $region28: #{_fused_forward.1} parent=11 // pred_fallthru
          _
        // Predicated region
        $region29: #{_fused_forward.1} parent=11 // pred_check
          %p231 = pneg %p146
        $region30: #{_fused_forward.1} parent=11 // pred_check_branch
          %233 = sbr.rel (%p231) target = $region32
        $region31: #{_fused_forward.1} parent=11 // pred_region
          %235 = vsyncadd [#allocation5], 0
          %s236 = sshll.u32 %s5, 4
          %s237 = int_to_ptr.hbm [resolvable:$true] %s236
          %s238 = sshll.u32 [#allocation4], 4
          %s239 = int_to_ptr.vmem [resolvable:$true] %s238
          %244 = dma.hbm_to_vmem [thread:$0]  %s237, 1024, %s239, [#allocation5], 64, 64, 4
        $region32: #{_fused_forward.1} parent=11 // pred_fallthru
          _
        // Predicated region
        $region33: #{_fused_forward.1} parent=11 // pred_check
          %p245 = pneg %p167
        $region34: #{_fused_forward.1} parent=11 // pred_check_branch
          %247 = sbr.rel (%p245) target = $region36
        $region35: #{_fused_forward.1} parent=11 // pred_region
          _
        $region36: #{_fused_forward.1} parent=11 // pred_fallthru
          _
      $region12: #{_fused_forward.1} parent=5 // pred_fallthru
        _
      %p248 = scmp.lt.s32.totalorder %s15, 2
      // Predicated region
      $region37: #{_fused_forward.1} parent=5 // pred_check
        %p249 = pneg %p248
      $region38: #{_fused_forward.1} parent=5 // pred_check_branch
        %251 = sbr.rel (%p249) target = $region40
      $region39: #{_fused_forward.1} parent=5 // pred_region
        // Predicated region
        $region41: #{_fused_forward.1} parent=39 // pred_check
          %p252 = pneg %p35
        $region42: #{_fused_forward.1} parent=39 // pred_check_branch
          %254 = sbr.rel (%p252) target = $region44
        $region43: #{_fused_forward.1} parent=39 // pred_region
          %s255 = smul.u32 2, %s15
          %p256 = scmp.lt.s32.totalorder %s255, 3
          %s257 = scalar_select %p256, %s255, 3
          %s258 = smul.addr %s257, 4
          %s259 = scalar_lea.vmem %s0, %s258
          %s260 = smul.u32 2, %s15
        $region44: #{_fused_forward.1} parent=39 // pred_fallthru
          _
      $region40: #{_fused_forward.1} parent=5 // pred_fallthru
        _
      %p261 = scmp.le.s32.totalorder 1, %s15
      %p262 = scmp.lt.s32.totalorder %s15, 3
      %p263 = pnand %p261, %p262
      %p264 = pneg %p263
      // Predicated region
      $region45: #{_fused_forward.1} parent=5 // pred_check
        _
      $region46: #{_fused_forward.1} parent=5 // pred_check_branch
        %266 = sbr.rel (%p263) target = $region48
      $region47: #{_fused_forward.1} parent=5 // pred_region
        %s267 = ssub.s32 %s15, 1
        // Predicated region
        $region49: #{_fused_forward.1} parent=47 // pred_check
          %p268 = pneg %p104
        $region50: #{_fused_forward.1} parent=47 // pred_check_branch
          %270 = sbr.rel (%p268) target = $region52
        $region51: #{_fused_forward.1} parent=47 // pred_region
          %272 = dma.done [#allocation3], 1024
        $region52: #{_fused_forward.1} parent=47 // pred_fallthru
          _
        // Predicated region
        $region53: #{_fused_forward.1} parent=47 // pred_check
          %p273 = pneg %p146
        $region54: #{_fused_forward.1} parent=47 // pred_check_branch
          %275 = sbr.rel (%p273) target = $region56
        $region55: #{_fused_forward.1} parent=47 // pred_region
          %277 = dma.done [#allocation5], 1024
        $region56: #{_fused_forward.1} parent=47 // pred_fallthru
          _
        %s278 = smul.u32 2, %s20
        %p279 = scmp.lt.s32.totalorder %s278, 3
        %s280 = scalar_select %p279, %s278, 3
        %s281 = smul.addr %s280, 4
        %s282 = scalar_lea.vmem %s0, %s281
        %p283 = pneg %p41
        %p284 = pneg %p38
        %p285 = pneg %p62
        %p286 = pneg %p59
        %p287 = pneg %p83
        %p288 = pneg %p80
        %p289 = pneg %p104
        %p290 = pneg %p101
        %p291 = pneg %p125
        %p292 = pneg %p122
        %p293 = pneg %p146
        %p294 = pneg %p143
        %p295 = pneg %p167
        %p296 = pneg %p164
        %p297 = pneg %p193
        %p298 = pneg %p190
        %s299 = smul.u32 2, %s20
        %p300 = scmp.lt.s32.totalorder %s299, 3
        %s301 = scalar_select %p300, %s299, 3
        %s302 = smul.addr %s301, 8
        %s303 = scalar_lea.vmem %s7, %s302
        %s304 = smul.u32 2, %s20
        %p305 = scmp.lt.s32.totalorder %s304, 3
        %s306 = scalar_select %p305, %s304, 3
        %s307 = smul.addr %s306, 4
        %s308 = scalar_lea.vmem %s0, %s307
        %s309 = smul.u32 2, %s20
        %s310 = smul.u32 2, %s20
        %p311 = scmp.lt.s32.totalorder %s310, 3
        %s312 = scalar_select %p311, %s310, 3
        %s313 = smul.addr %s312, 8
        %s314 = scalar_lea.vmem %s7, %s313
        %s315 = smul.u32 2, %s20
        %v316 = vld [vmem:[%s308] sm:$0xf]
        %v317 = vld [vmem:[%s308 + $0x4] sm:$0xf]
        %v318 = vld [vmem:[%s1] sm:$0xf]
        %v319 = vld [vmem:[%s1 + $0x4] sm:$0xf]
        %v320 = vld [vmem:[%s1 + $0x8] sm:$0xf]
        %v321 = vld [vmem:[%s1 + $0xc] sm:$0xf]
        %v322 = vld [vmem:[%s1 + $0x10] sm:$0xf]
        %v323 = vld [vmem:[%s1 + $0x14] sm:$0xf]
        %v324 = vld [vmem:[%s1 + $0x18] sm:$0xf]
        %v325 = vld [vmem:[%s1 + $0x1c] sm:$0xf]
        %v326 = vld [vmem:[%s1 + $0x20] sm:$0xf]
        %v327 = vld [vmem:[%s1 + $0x24] sm:$0xf]
        %v328 = vld [vmem:[%s1 + $0x28] sm:$0xf]
        %v329 = vld [vmem:[%s1 + $0x2c] sm:$0xf]
        %v330 = vld [vmem:[%s1 + $0x30] sm:$0xf]
        %v331 = vld [vmem:[%s1 + $0x34] sm:$0xf]
        %v332 = vld [vmem:[%s1 + $0x38] sm:$0xf]
        %v333 = vld [vmem:[%s1 + $0x3c] sm:$0xf]
        %v334 = vld [vmem:[%s2] sm:$0x1]
        %v336 = vperm.slane %v334, 0
        %v340 = vunpack.c.l.b16 %v316
        %v341 = vunpack.c.l.b16 %v317
        %v342 = vpack.c.b16 %v341, %v340
        %v360 = vunpack.c.l.b16 %v318
        %v361 = vunpack.c.l.b16 %v319
        %v362 = vunpack.c.l.b16 %v320
        %v363 = vunpack.c.l.b16 %v321
        %v364 = vunpack.c.l.b16 %v322
        %v365 = vunpack.c.l.b16 %v323
        %v366 = vunpack.c.l.b16 %v324
        %v367 = vunpack.c.l.b16 %v325
        %v368 = vunpack.c.l.b16 %v326
        %v369 = vunpack.c.l.b16 %v327
        %v370 = vunpack.c.l.b16 %v328
        %v371 = vunpack.c.l.b16 %v329
        %v372 = vunpack.c.l.b16 %v330
        %v373 = vunpack.c.l.b16 %v331
        %v374 = vunpack.c.l.b16 %v332
        %v375 = vunpack.c.l.b16 %v333
        %v376 = vpack.c.b16 %v361, %v360
        %v377 = vpack.c.b16 %v363, %v362
        %v378 = vpack.c.b16 %v365, %v364
        %v379 = vpack.c.b16 %v367, %v366
        %v380 = vpack.c.b16 %v369, %v368
        %v381 = vpack.c.b16 %v371, %v370
        %v382 = vpack.c.b16 %v373, %v372
        %v383 = vpack.c.b16 %v375, %v374
        %392 = vmatpush.bf16.msra.mxu0 %v383
        %393 = vmatpush.bf16.msra.mxu0 %v382
        %394 = vmatpush.bf16.msra.mxu0 %v381
        %395 = vmatpush.bf16.msra.mxu0 %v380
        %396 = vmatpush.bf16.msra.mxu0 %v379
        %397 = vmatpush.bf16.msra.mxu0 %v378
        %398 = vmatpush.bf16.msra.mxu0 %v377
        %399 = vmatpush.bf16.msra.mxu0 %v376
        %400 = vmatmul.bf16.gmra.mxu0 %v342
        %v401 = vpop.f32.mrf.mxu0
        %v402 = vadd.f32 %v336, %v401
        %v403 = vpop.f32.mrf.mxu0
        %v404 = vadd.f32 %v336, %v403
        %405 = vdwg.mxu0
        %v406 = vmax.f32 %v402, 0.0
        %v407 = vmax.f32 %v404, 0.0
        %v408 = vpack.c.bf16 %v407, %v406
        %v409 = vld [vmem:[#allocation2] sm:$0xf]
        %v410 = vld [vmem:[#allocation2 + $0x4] sm:$0xf]
        %v411 = vld [vmem:[#allocation2 + $0x8] sm:$0xf]
        %v412 = vld [vmem:[#allocation2 + $0xc] sm:$0xf]
        %v413 = vld [vmem:[#allocation2 + $0x10] sm:$0xf]
        %v414 = vld [vmem:[#allocation2 + $0x14] sm:$0xf]
        %v415 = vld [vmem:[#allocation2 + $0x18] sm:$0xf]
        %v416 = vld [vmem:[#allocation2 + $0x1c] sm:$0xf]
        %v417 = vld [vmem:[#allocation2 + $0x20] sm:$0xf]
        %v418 = vld [vmem:[#allocation2 + $0x24] sm:$0xf]
        %v419 = vld [vmem:[#allocation2 + $0x28] sm:$0xf]
        %v420 = vld [vmem:[#allocation2 + $0x2c] sm:$0xf]
        %v421 = vld [vmem:[#allocation2 + $0x30] sm:$0xf]
        %v422 = vld [vmem:[#allocation2 + $0x34] sm:$0xf]
        %v423 = vld [vmem:[#allocation2 + $0x38] sm:$0xf]
        %v424 = vld [vmem:[#allocation2 + $0x3c] sm:$0xf]
        %v425 = vld [vmem:[%s4] sm:$0x1]
        %v427 = vperm.slane %v425, 0
        %v445 = vunpack.c.l.b16 %v409
        %v446 = vunpack.c.l.b16 %v410
        %v447 = vunpack.c.l.b16 %v411
        %v448 = vunpack.c.l.b16 %v412
        %v449 = vunpack.c.l.b16 %v413
        %v450 = vunpack.c.l.b16 %v414
        %v451 = vunpack.c.l.b16 %v415
        %v452 = vunpack.c.l.b16 %v416
        %v453 = vunpack.c.l.b16 %v417
        %v454 = vunpack.c.l.b16 %v418
        %v455 = vunpack.c.l.b16 %v419
        %v456 = vunpack.c.l.b16 %v420
        %v457 = vunpack.c.l.b16 %v421
        %v458 = vunpack.c.l.b16 %v422
        %v459 = vunpack.c.l.b16 %v423
        %v460 = vunpack.c.l.b16 %v424
        %v461 = vpack.c.b16 %v446, %v445
        %v462 = vpack.c.b16 %v448, %v447
        %v463 = vpack.c.b16 %v450, %v449
        %v464 = vpack.c.b16 %v452, %v451
        %v465 = vpack.c.b16 %v454, %v453
        %v466 = vpack.c.b16 %v456, %v455
        %v467 = vpack.c.b16 %v458, %v457
        %v468 = vpack.c.b16 %v460, %v459
        %477 = vmatpush.bf16.msra.mxu0 %v468
        %478 = vmatpush.bf16.msra.mxu0 %v467
        %479 = vmatpush.bf16.msra.mxu0 %v466
        %480 = vmatpush.bf16.msra.mxu0 %v465
        %481 = vmatpush.bf16.msra.mxu0 %v464
        %482 = vmatpush.bf16.msra.mxu0 %v463
        %483 = vmatpush.bf16.msra.mxu0 %v462
        %484 = vmatpush.bf16.msra.mxu0 %v461
        %485 = vmatmul.bf16.gmra.mxu0 %v408
        %v486 = vpop.f32.mrf.mxu0
        %v487 = vadd.f32 %v427, %v486
        %v488 = vpop.f32.mrf.mxu0
        %v489 = vadd.f32 %v427, %v488
        %490 = vdwg.mxu0
        %v491 = vmax.f32 %v487, 0.0
        %v492 = vmax.f32 %v489, 0.0
        %v493 = vpack.c.bf16 %v492, %v491
        %v494 = vld [vmem:[#allocation4] sm:$0xf]
        %v495 = vld [vmem:[#allocation4 + $0x4] sm:$0xf]
        %v496 = vld [vmem:[#allocation4 + $0x8] sm:$0xf]
        %v497 = vld [vmem:[#allocation4 + $0xc] sm:$0xf]
        %v498 = vld [vmem:[#allocation4 + $0x10] sm:$0xf]
        %v499 = vld [vmem:[#allocation4 + $0x14] sm:$0xf]
        %v500 = vld [vmem:[#allocation4 + $0x18] sm:$0xf]
        %v501 = vld [vmem:[#allocation4 + $0x1c] sm:$0xf]
        %v502 = vld [vmem:[#allocation4 + $0x20] sm:$0xf]
        %v503 = vld [vmem:[#allocation4 + $0x24] sm:$0xf]
        %v504 = vld [vmem:[#allocation4 + $0x28] sm:$0xf]
        %v505 = vld [vmem:[#allocation4 + $0x2c] sm:$0xf]
        %v506 = vld [vmem:[#allocation4 + $0x30] sm:$0xf]
        %v507 = vld [vmem:[#allocation4 + $0x34] sm:$0xf]
        %v508 = vld [vmem:[#allocation4 + $0x38] sm:$0xf]
        %v509 = vld [vmem:[#allocation4 + $0x3c] sm:$0xf]
        %v510 = vld [vmem:[%s6] sm:$0x1]
        %v512 = vperm.slane %v510, 0
        %v530 = vunpack.c.l.b16 %v494
        %v531 = vunpack.c.l.b16 %v495
        %v532 = vunpack.c.l.b16 %v496
        %v533 = vunpack.c.l.b16 %v497
        %v534 = vunpack.c.l.b16 %v498
        %v535 = vunpack.c.l.b16 %v499
        %v536 = vunpack.c.l.b16 %v500
        %v537 = vunpack.c.l.b16 %v501
        %v538 = vunpack.c.l.b16 %v502
        %v539 = vunpack.c.l.b16 %v503
        %v540 = vunpack.c.l.b16 %v504
        %v541 = vunpack.c.l.b16 %v505
        %v542 = vunpack.c.l.b16 %v506
        %v543 = vunpack.c.l.b16 %v507
        %v544 = vunpack.c.l.b16 %v508
        %v545 = vunpack.c.l.b16 %v509
        %v546 = vpack.c.b16 %v531, %v530
        %v547 = vpack.c.b16 %v533, %v532
        %v548 = vpack.c.b16 %v535, %v534
        %v549 = vpack.c.b16 %v537, %v536
        %v550 = vpack.c.b16 %v539, %v538
        %v551 = vpack.c.b16 %v541, %v540
        %v552 = vpack.c.b16 %v543, %v542
        %v553 = vpack.c.b16 %v545, %v544
        %562 = vmatpush.bf16.msra.mxu0 %v553
        %563 = vmatpush.bf16.msra.mxu0 %v552
        %564 = vmatpush.bf16.msra.mxu0 %v551
        %565 = vmatpush.bf16.msra.mxu0 %v550
        %566 = vmatpush.bf16.msra.mxu0 %v549
        %567 = vmatpush.bf16.msra.mxu0 %v548
        %568 = vmatpush.bf16.msra.mxu0 %v547
        %569 = vmatpush.bf16.msra.mxu0 %v546
        %570 = vmatmul.bf16.gmra.mxu0 %v493
        %v571 = vpop.f32.mrf.mxu0
        %v572 = vadd.f32 %v512, %v571
        %v573 = vpop.f32.mrf.mxu0
        %v574 = vadd.f32 %v512, %v573
        %575 = vdwg.mxu0
        %576 = vst [vmem:[%s314] sm:$0xff] %v572
        %577 = vst [vmem:[%s314 + $0x8] sm:$0xff] %v574
        %s578 = smul.u32 2, %s20
        %p579 = scmp.lt.s32.totalorder %s578, 3
        %s580 = scalar_select %p579, %s578, 3
        %s581 = smul.addr %s580, 8
        %s582 = scalar_lea.vmem %s7, %s581
        // Predicated region
        $region57: #{_fused_forward.1} parent=47 // pred_check
          %p583 = pneg %p190
        $region58: #{_fused_forward.1} parent=47 // pred_check_branch
          %585 = sbr.rel (%p583) target = $region60
        $region59: #{_fused_forward.1} parent=47 // pred_region
          %s586 = smul.u32 2, %s20
        $region60: #{_fused_forward.1} parent=47 // pred_fallthru
          _
      $region48: #{_fused_forward.1} parent=5 // pred_fallthru
        _
      %p587 = scmp.le.s32.totalorder 2, %s15
      // Predicated region
      $region61: #{_fused_forward.1} parent=5 // pred_check
        %p588 = pneg %p587
      $region62: #{_fused_forward.1} parent=5 // pred_check_branch
        %590 = sbr.rel (%p588) target = $region64
      $region63: #{_fused_forward.1} parent=5 // pred_region
        %s591 = ssub.s32 %s15, 2
        // Predicated region
        $region65: #{_fused_forward.1} parent=63 // pred_check
          %p592 = pneg %p196
        $region66: #{_fused_forward.1} parent=63 // pred_check_branch
          %594 = sbr.rel (%p592) target = $region68
        $region67: #{_fused_forward.1} parent=63 // pred_region
          %s595 = smul.u32 2, %s21
          %p596 = scmp.lt.s32.totalorder %s595, 3
          %s597 = scalar_select %p596, %s595, 3
          %s598 = smul.addr %s597, 8
          %s599 = scalar_lea.vmem %s7, %s598
        $region68: #{_fused_forward.1} parent=63 // pred_fallthru
          _
      $region64: #{_fused_forward.1} parent=5 // pred_fallthru
        _
    $region6: #{_fused_forward.1} parent=1 // loop_footer
      %s19 = sadd.s32 1, %s15
    $region7: #{_fused_forward.1} parent=1 // loop_footer_branch
      %14 = sbr.rel target = $region3
    $region8: #{_fused_forward.1} parent=1 // loop_exit
      _
    %600 = vsyncpa [#allocation3], 1
    %s601 = scalar_lea.sflag [#allocation3], 1
    %602 = vsyncpa %s601, 1
    %603 = vsyncpa [#allocation5], 1

</llo_original>
